<compile_context>
chip_gen: v7x
topology: tpu7x:2x2x1
jax: 0.10.0
libtpu: 0.0.40
codegen_flags: <defaults>
</compile_context>

<pallas_src>
from functools import partial

import jax
import jax.numpy as jnp
from jax import lax
from jax.experimental import pallas as pl
from jax.experimental.pallas import tpu as pltpu


def _round_up(x, m):
    return ((x + m - 1) // m) * m


def _contrast_kernel(xi_ref, xj_ref, loss_ref, gii_ref, gij_ref, gjj_ref,
                     *, batch_size, f_dim, tile_f, inv_temp, mask_ragged_f):
    B = batch_size
    k = pl.program_id(0)

    # ---- init accumulators on first F tile -------------------------------
    @pl.when(k == 0)
    def _():
        gii_ref[...] = jnp.zeros_like(gii_ref)
        gij_ref[...] = jnp.zeros_like(gij_ref)
        gjj_ref[...] = jnp.zeros_like(gjj_ref)

    # ---- accumulate Gram blocks over this F tile (MXU, no transpose) -----
    xi = xi_ref[...]                       # (B, tile_f), native dtype (bf16/f32)
    xj = xj_ref[...]
    if mask_ragged_f:
        # Last F tile extends past F; out-of-bounds lanes hold stale VMEM data,
        # so zero them before the contraction (static python gate: only emitted
        # when F % tile_f != 0).
        col = lax.broadcasted_iota(jnp.int32, (B, tile_f), 1)
        fvalid = (k * tile_f + col) < f_dim
        xi = jnp.where(fvalid, xi, jnp.zeros_like(xi))
        xj = jnp.where(fvalid, xj, jnp.zeros_like(xj))

    dn = (((1,), (1,)), ((), ()))          # contract lane-major F axis of both
    gii_ref[...] += lax.dot_general(xi, xi, dn, preferred_element_type=jnp.float32)
    gij_ref[...] += lax.dot_general(xi, xj, dn, preferred_element_type=jnp.float32)
    gjj_ref[...] += lax.dot_general(xj, xj, dn, preferred_element_type=jnp.float32)

    # ---- epilogue on last F tile: normalize, exp, log-sum, loss ----------
    @pl.when(k == pl.num_programs(0) - 1)
    def _():
        Gii = gii_ref[...]
        Gij = gij_ref[...]
        Gjj = gjj_ref[...]

        row = lax.broadcasted_iota(jnp.int32, (B, B), 0)
        col = lax.broadcasted_iota(jnp.int32, (B, B), 1)
        is_diag = row == col
        off_diag = jnp.logical_not(is_diag)

        # Row sums-of-squares live on the Gram diagonals.  Mask once, reduce
        # in both orientations from the same masked matrix (Gii/Gjj symmetric).
        dii = jnp.where(is_diag, Gii, 0.0)
        djj = jnp.where(is_diag, Gjj, 0.0)
        inv_i_c = lax.rsqrt(jnp.maximum(jnp.sum(dii, axis=1, keepdims=True), 1e-24))  # (B,1)
        inv_j_c = lax.rsqrt(jnp.maximum(jnp.sum(djj, axis=1, keepdims=True), 1e-24))  # (B,1)
        inv_i_r = lax.rsqrt(jnp.maximum(jnp.sum(dii, axis=0, keepdims=True), 1e-24))  # (1,B)
        inv_j_r = lax.rsqrt(jnp.maximum(jnp.sum(djj, axis=0, keepdims=True), 1e-24))  # (1,B)

        # Cosine similarities; inv_temp applied at the exp (compile-time const).
        sim_ii = Gii * (inv_i_c * inv_i_r)
        sim_ij = Gij * (inv_i_c * inv_j_r)
        sim_jj = Gjj * (inv_j_c * inv_j_r)

        # NOTE: no max-subtraction before exp (matches PyTorch reference);
        # f32 overflows only for temperature <~ 0.01.
        e_ii = jnp.where(off_diag, jnp.exp(sim_ii * inv_temp), 0.0)
        e_jj = jnp.where(off_diag, jnp.exp(sim_jj * inv_temp), 0.0)
        e_ij = jnp.exp(sim_ij * inv_temp)

        # denom for i-half rows (row sums) and j-half rows (column sums, using
        # symmetry exp(sim_ji[b,a]) == exp(sim_ij[a,b])); Gji never materialized.
        denom_i = jnp.sum(e_ii, axis=1, keepdims=True) + \
                  jnp.sum(e_ij, axis=1, keepdims=True)          # (B,1)
        denom_j = jnp.sum(e_jj, axis=0, keepdims=True) + \
                  jnp.sum(e_ij, axis=0, keepdims=True)          # (1,B)

        sum_log = jnp.sum(jnp.log(denom_i)) + jnp.sum(jnp.log(denom_j))
        # positives: pos[a] = sim_ij[a,a]; same value for both halves.
        sum_pos = jnp.sum(jnp.where(is_diag, sim_ij, 0.0))

        # sum_rows( log(denom) - pos/temp ) / (2B)
        loss_ref[0, 0] = (sum_log - 2.0 * inv_temp * sum_pos) / (2.0 * B)


def contrast_loss(x_i, x_j, batch_size, temperature=0.5, tile_f=None, buffer_count=2):
    """NT-Xent loss, equivalent to Contrast(args, batch_size, temperature)(x_i, x_j)."""
    B = int(batch_size)
    xi = x_i.reshape(B, -1)                # flatten(start_dim=1, end_dim=2)
    xj = x_j.reshape(B, -1)
    # Keep bf16/f32 as-is (bf16 feeds the MXU directly); anything else -> f32.
    if xi.dtype not in (jnp.dtype(jnp.bfloat16), jnp.dtype(jnp.float32)):
        xi = xi.astype(jnp.float32)
        xj = xj.astype(jnp.float32)
    F_dim = xi.shape[1]
    itemsize = xi.dtype.itemsize

    # ---- generation-aware VMEM budget -------------------------------------
    try:
        vmem_cap = int(getattr(pltpu.get_tpu_info(), "vmem_capacity_bytes", 64 << 20))
    except Exception:                      # pragma: no cover - conservative fallback
        vmem_cap = 64 << 20
    nbuf = max(2, int(buffer_count))
    Bs = _round_up(B, 8)                   # sublane-padded layout rows (budget only)
    Bl = _round_up(B, 128)                 # lane-padded accumulator columns
    acc_bytes = 3 * Bs * Bl * 4            # three f32 (B,B) Gram accumulators
    usable = int(vmem_cap * 0.8)
    min_input_bytes = 2 * nbuf * Bs * 128 * itemsize
    if acc_bytes + min_input_bytes > usable:
        raise ValueError(
            f"batch_size={B}: {acc_bytes / 2**20:.1f} MiB of Gram accumulators does not "
            f"fit this TPU's {vmem_cap / 2**20:.0f} MiB VMEM; tile over B row-blocks "
            f"(see TODO) or reduce the per-device batch.")

    # ---- feature-tile size: 128-aligned, ~8 MiB per DMA, capped by VMEM ----
    F_aligned = _round_up(F_dim, 128)
    if tile_f is None:
        avail = usable - acc_bytes - (2 << 20)
        per_col = 2 * nbuf * Bs * itemsize
        tf_mem = max(128, (avail // per_col) // 128 * 128)
        tf_dma = max(128, ((8 << 20) // (Bs * itemsize)) // 128 * 128)
        tile_f = min(F_aligned, tf_mem, tf_dma)
    else:
        tile_f = min(F_aligned, max(128, _round_up(int(tile_f), 128)))
    if tile_f >= F_dim:
        tile_f = F_dim                     # single full block (any F allowed)
    num_k = pl.cdiv(F_dim, tile_f)
    mask_ragged_f = (F_dim % tile_f) != 0  # ragged last tile handled in-kernel

    spec_kwargs = {} if nbuf == 2 else dict(pipeline_mode=pl.Buffered(nbuf))
    x_spec = pl.BlockSpec((B, tile_f), lambda k: (0, k), **spec_kwargs)

    needed = acc_bytes + 2 * nbuf * Bs * _round_up(tile_f, 128) * itemsize
    vmem_limit = max(16 << 20, min(int(vmem_cap * 0.9), needed + (4 << 20)))

    out = pl.pallas_call(
        partial(_contrast_kernel, batch_size=B, f_dim=F_dim, tile_f=tile_f,
                inv_temp=1.0 / float(temperature), mask_ragged_f=mask_ragged_f),
        out_shape=jax.ShapeDtypeStruct((1, 1), jnp.float32),
        grid=(num_k,),
        in_specs=[x_spec, x_spec],
        out_specs=pl.BlockSpec((1, 1), lambda k: (0, 0),
                               memory_space=pltpu.MemorySpace.SMEM),
        scratch_shapes=[
            pltpu.VMEM((B, B), jnp.float32),                    # Gii
            pltpu.VMEM((B, B), jnp.float32),                    # Gij
            pltpu.VMEM((B, B), jnp.float32),                    # Gjj
        ],
        compiler_params=pltpu.CompilerParams(
            dimension_semantics=("arbitrary",),                 # F is a reduction axis
            vmem_limit_bytes=int(vmem_limit)),
        cost_estimate=pl.CostEstimate(
            flops=2 * 3 * B * B * F_dim,
            transcendentals=3 * B * B + 4 * B,
            bytes_accessed=2 * B * F_dim * itemsize + 4),
    )(xi, xj)
    return out[0, 0]


def _reference(x_i, x_j, batch_size, temperature):
    """Pure-JAX transcription of the PyTorch forward, for validation."""
    B = batch_size
    xi = x_i.reshape(B, -1)
    xj = x_j.reshape(B, -1)
    zi = xi / jnp.maximum(jnp.linalg.norm(xi, axis=1, keepdims=True), 1e-12)
    zj = xj / jnp.maximum(jnp.linalg.norm(xj, axis=1, keepdims=True), 1e-12)
    z = jnp.concatenate([zi, zj], axis=0)
    sim = z @ z.T
    pos = jnp.concatenate([jnp.diagonal(sim, B), jnp.diagonal(sim, -B)], axis=0)
    nom = jnp.exp(pos / temperature)
    neg_mask = 1.0 - jnp.eye(2 * B, dtype=jnp.float32)
    denom = jnp.sum(neg_mask * jnp.exp(sim / temperature), axis=1)
    return jnp.sum(-jnp.log(nom / denom)) / (2 * B)


if __name__ == "__main__":
    key = jax.random.PRNGKey(0)
    k1, k2, k3, k4 = jax.random.split(key, 4)
    temperature = 0.5

    # 1) small aligned case, f32, single F tile (auto tiling).
    B, S, D = 4, 8, 32                     # features F = S*D = 256
    x_i = jax.random.normal(k1, (B, S, D), dtype=jnp.float32)
    x_j = jax.random.normal(k2, (B, S, D), dtype=jnp.float32)
    ref = _reference(x_i, x_j, B, temperature)
    loss = contrast_loss(x_i, x_j, batch_size=B, temperature=temperature)
    jax.block_until_ready(loss)
    assert abs(float(loss) - float(ref)) < 1e-4, (float(loss), float(ref))

    # 2) forced multi-tile path: exercises the K-tiled Gram accumulation + epilogue.
    loss_tiled = contrast_loss(x_i, x_j, batch_size=B, temperature=temperature, tile_f=128)
    jax.block_until_ready(loss_tiled)
    assert abs(float(loss_tiled) - float(ref)) < 1e-4, (float(loss_tiled), float(ref))

    # 3) ragged F (180) + non-8-aligned B (6): no wrapper-side padding anywhere,
    #    in-kernel masking of the last F tile.
    B2, S2, D2 = 6, 5, 36
    y_i = jax.random.normal(k3, (B2, S2, D2), dtype=jnp.float32)
    y_j = jax.random.normal(k4, (B2, S2, D2), dtype=jnp.float32)
    ref2 = _reference(y_i, y_j, B2, temperature)
    loss2 = contrast_loss(y_i, y_j, batch_size=B2, temperature=temperature, tile_f=128)
    jax.block_until_ready(loss2)
    assert abs(float(loss2) - float(ref2)) < 1e-4, (float(loss2), float(ref2))

    # 4) bf16 inputs stream straight to the MXU (no wrapper upcast); compared
    #    against the f32 reference evaluated on the same bf16-rounded inputs.
    z_i = x_i.astype(jnp.bfloat16)
    z_j = x_j.astype(jnp.bfloat16)
    ref3 = _reference(z_i.astype(jnp.float32), z_j.astype(jnp.float32), B, temperature)
    loss3 = contrast_loss(z_i, z_j, batch_size=B, temperature=temperature, tile_f=128)
    jax.block_until_ready(loss3)
    assert abs(float(loss3) - float(ref3)) < 1e-3, (float(loss3), float(ref3))

    print("KERNEL_OK")
</pallas_src>

<mosaic_0001>
module attributes {stable_mosaic.version = 11 : i64} {
  func.func @_contrast_kernel(%arg0: i32, %arg1: memref<4x256xf32, #tpu.memory_space<vmem>>, %arg2: memref<4x256xf32, #tpu.memory_space<vmem>>, %arg3: memref<1x1xf32, #tpu.memory_space<smem>>, %arg4: memref<4x4xf32, #tpu.memory_space<vmem>>, %arg5: memref<4x4xf32, #tpu.memory_space<vmem>>, %arg6: memref<4x4xf32, #tpu.memory_space<vmem>>) attributes {dimension_semantics = [#tpu.dimension_semantics<arbitrary>], iteration_bounds = array<i64: 1>, scalar_prefetch = 0 : i64, scratch_operands = 3 : i64, tpu.core_type = #tpu.core_type<tc>, window_params = [{transform_indices = @transform_0, window_bounds = array<i64: 4, 256>}, {transform_indices = @transform_1, window_bounds = array<i64: 4, 256>}, {transform_indices = @transform_2, window_bounds = array<i64: 1, 1>}]} {
    %c0_i32 = arith.constant 0 : i32
    %0 = arith.cmpi eq, %arg0, %c0_i32 : i32
    %1 = arith.extui %0 : i1 to i32
    %c0_i32_0 = arith.constant 0 : i32
    %2 = arith.cmpi ne, %1, %c0_i32_0 : i32
    scf.if %2 {
      %cst_20 = arith.constant 0.000000e+00 : f32
      %20 = vector.broadcast %cst_20 : f32 to vector<4x4xf32>
      %c0_21 = arith.constant 0 : index
      %c0_22 = arith.constant 0 : index
      %21 = vector.load %arg4[%c0_21, %c0_22] : memref<4x4xf32, #tpu.memory_space<vmem>>, vector<4x4xf32>
      tpu.vector_store %arg4[%c0_21, %c0_22], %20 {strides = array<i32>} : memref<4x4xf32, #tpu.memory_space<vmem>>, vector<4x4xf32>,
      %cst_23 = arith.constant 0.000000e+00 : f32
      %22 = vector.broadcast %cst_23 : f32 to vector<4x4xf32>
      %c0_24 = arith.constant 0 : index
      %c0_25 = arith.constant 0 : index
      %23 = vector.load %arg5[%c0_24, %c0_25] : memref<4x4xf32, #tpu.memory_space<vmem>>, vector<4x4xf32>
      tpu.vector_store %arg5[%c0_24, %c0_25], %22 {strides = array<i32>} : memref<4x4xf32, #tpu.memory_space<vmem>>, vector<4x4xf32>,
      %cst_26 = arith.constant 0.000000e+00 : f32
      %24 = vector.broadcast %cst_26 : f32 to vector<4x4xf32>
      %c0_27 = arith.constant 0 : index
      %c0_28 = arith.constant 0 : index
      %25 = vector.load %arg6[%c0_27, %c0_28] : memref<4x4xf32, #tpu.memory_space<vmem>>, vector<4x4xf32>
      tpu.vector_store %arg6[%c0_27, %c0_28], %24 {strides = array<i32>} : memref<4x4xf32, #tpu.memory_space<vmem>>, vector<4x4xf32>,
    } else {
    }
    %c0 = arith.constant 0 : index
    %c0_1 = arith.constant 0 : index
    %3 = vector.load %arg1[%c0, %c0_1] : memref<4x256xf32, #tpu.memory_space<vmem>>, vector<4x256xf32>
    %c0_2 = arith.constant 0 : index
    %c0_3 = arith.constant 0 : index
    %4 = vector.load %arg2[%c0_2, %c0_3] : memref<4x256xf32, #tpu.memory_space<vmem>>, vector<4x256xf32>
    %c0_4 = arith.constant 0 : index
    %c0_5 = arith.constant 0 : index
    %5 = vector.load %arg4[%c0_4, %c0_5] : memref<4x4xf32, #tpu.memory_space<vmem>>, vector<4x4xf32>
    %cst = arith.constant dense<0.000000e+00> : vector<4x4xf32>
    %6 = tpu.matmul %3, %3, %cst {dimension_numbers = #tpu.dot_dimension_numbers<[1], [1], [0], [0], [0, 0, 1, 0], [], []>} : vector<4x256xf32>, vector<4x256xf32>, vector<4x4xf32> -> vector<4x4xf32>
    %7 = arith.addf %5, %6 : vector<4x4xf32>
    %c0_6 = arith.constant 0 : index
    %c0_7 = arith.constant 0 : index
    %8 = vector.load %arg4[%c0_6, %c0_7] : memref<4x4xf32, #tpu.memory_space<vmem>>, vector<4x4xf32>
    tpu.vector_store %arg4[%c0_6, %c0_7], %7 {strides = array<i32>} : memref<4x4xf32, #tpu.memory_space<vmem>>, vector<4x4xf32>,
    %c0_8 = arith.constant 0 : index
    %c0_9 = arith.constant 0 : index
    %9 = vector.load %arg5[%c0_8, %c0_9] : memref<4x4xf32, #tpu.memory_space<vmem>>, vector<4x4xf32>
    %cst_10 = arith.constant dense<0.000000e+00> : vector<4x4xf32>
    %10 = tpu.matmul %3, %4, %cst_10 {dimension_numbers = #tpu.dot_dimension_numbers<[1], [1], [0], [0], [0, 0, 1, 0], [], []>} : vector<4x256xf32>, vector<4x256xf32>, vector<4x4xf32> -> vector<4x4xf32>
    %11 = arith.addf %9, %10 : vector<4x4xf32>
    %c0_11 = arith.constant 0 : index
    %c0_12 = arith.constant 0 : index
    %12 = vector.load %arg5[%c0_11, %c0_12] : memref<4x4xf32, #tpu.memory_space<vmem>>, vector<4x4xf32>
    tpu.vector_store %arg5[%c0_11, %c0_12], %11 {strides = array<i32>} : memref<4x4xf32, #tpu.memory_space<vmem>>, vector<4x4xf32>,
    %c0_13 = arith.constant 0 : index
    %c0_14 = arith.constant 0 : index
    %13 = vector.load %arg6[%c0_13, %c0_14] : memref<4x4xf32, #tpu.memory_space<vmem>>, vector<4x4xf32>
    %cst_15 = arith.constant dense<0.000000e+00> : vector<4x4xf32>
    %14 = tpu.matmul %4, %4, %cst_15 {dimension_numbers = #tpu.dot_dimension_numbers<[1], [1], [0], [0], [0, 0, 1, 0], [], []>} : vector<4x256xf32>, vector<4x256xf32>, vector<4x4xf32> -> vector<4x4xf32>
    %15 = arith.addf %13, %14 : vector<4x4xf32>
    %c0_16 = arith.constant 0 : index
    %c0_17 = arith.constant 0 : index
    %16 = vector.load %arg6[%c0_16, %c0_17] : memref<4x4xf32, #tpu.memory_space<vmem>>, vector<4x4xf32>
    tpu.vector_store %arg6[%c0_16, %c0_17], %15 {strides = array<i32>} : memref<4x4xf32, #tpu.memory_space<vmem>>, vector<4x4xf32>,
    %c0_i32_18 = arith.constant 0 : i32
    %17 = arith.cmpi eq, %arg0, %c0_i32_18 : i32
    %18 = arith.extui %17 : i1 to i32
    %c0_i32_19 = arith.constant 0 : i32
    %19 = arith.cmpi ne, %18, %c0_i32_19 : i32
    scf.if %19 {
      %c0_20 = arith.constant 0 : index
      %c0_21 = arith.constant 0 : index
      %20 = vector.load %arg4[%c0_20, %c0_21] : memref<4x4xf32, #tpu.memory_space<vmem>>, vector<4x4xf32>
      %c0_22 = arith.constant 0 : index
      %c0_23 = arith.constant 0 : index
      %21 = vector.load %arg5[%c0_22, %c0_23] : memref<4x4xf32, #tpu.memory_space<vmem>>, vector<4x4xf32>
      %c0_24 = arith.constant 0 : index
      %c0_25 = arith.constant 0 : index
      %22 = vector.load %arg6[%c0_24, %c0_25] : memref<4x4xf32, #tpu.memory_space<vmem>>, vector<4x4xf32>
      %23 = tpu.iota {dimensions = array<i32: 0>} : vector<4x4xi32>
      %24 = tpu.iota {dimensions = array<i32: 1>} : vector<4x4xi32>
      %25 = arith.cmpi eq, %23, %24 : vector<4x4xi32>
      %cst_26 = arith.constant dense<true> : vector<4x4xi1>
      %26 = arith.xori %25, %cst_26 : vector<4x4xi1>
      %cst_27 = arith.constant 0.000000e+00 : f32
      %27 = vector.broadcast %cst_27 : f32 to vector<4x4xf32>
      %28 = arith.select %25, %20, %27 : vector<4x4xi1>, vector<4x4xf32>
      %cst_28 = arith.constant 0.000000e+00 : f32
      %29 = vector.broadcast %cst_28 : f32 to vector<4x4xf32>
      %30 = arith.select %25, %22, %29 : vector<4x4xi1>, vector<4x4xf32>
      %cst_29 = arith.constant dense<0.000000e+00> : vector<4xf32>
      %31 = vector.multi_reduction <add>, %28, %cst_29 [1] : vector<4x4xf32> to vector<4xf32>
      %32 = vector.shape_cast %31 : vector<4xf32> to vector<4x1xf32>
      %cst_30 = arith.constant 1.000000e-24 : f32
      %33 = vector.broadcast %cst_30 : f32 to vector<4x1xf32>
      %34 = arith.maximumf %32, %33 : vector<4x1xf32>
      %35 = math.rsqrt %34 : vector<4x1xf32>
      %cst_31 = arith.constant dense<0.000000e+00> : vector<4xf32>
      %36 = vector.multi_reduction <add>, %30, %cst_31 [1] : vector<4x4xf32> to vector<4xf32>
      %37 = vector.shape_cast %36 : vector<4xf32> to vector<4x1xf32>
      %cst_32 = arith.constant 1.000000e-24 : f32
      %38 = vector.broadcast %cst_32 : f32 to vector<4x1xf32>
      %39 = arith.maximumf %37, %38 : vector<4x1xf32>
      %40 = math.rsqrt %39 : vector<4x1xf32>
      %cst_33 = arith.constant dense<0.000000e+00> : vector<4xf32>
      %41 = vector.multi_reduction <add>, %28, %cst_33 [0] : vector<4x4xf32> to vector<4xf32>
      %42 = vector.shape_cast %41 : vector<4xf32> to vector<1x4xf32>
      %cst_34 = arith.constant 1.000000e-24 : f32
      %43 = vector.broadcast %cst_34 : f32 to vector<1x4xf32>
      %44 = arith.maximumf %42, %43 : vector<1x4xf32>
      %45 = math.rsqrt %44 : vector<1x4xf32>
      %cst_35 = arith.constant dense<0.000000e+00> : vector<4xf32>
      %46 = vector.multi_reduction <add>, %30, %cst_35 [0] : vector<4x4xf32> to vector<4xf32>
      %47 = vector.shape_cast %46 : vector<4xf32> to vector<1x4xf32>
      %cst_36 = arith.constant 1.000000e-24 : f32
      %48 = vector.broadcast %cst_36 : f32 to vector<1x4xf32>
      %49 = arith.maximumf %47, %48 : vector<1x4xf32>
      %50 = math.rsqrt %49 : vector<1x4xf32>
      %51 = vector.broadcast %35 : vector<4x1xf32> to vector<4x4xf32>
      %52 = vector.broadcast %45 : vector<1x4xf32> to vector<4x4xf32>
      %53 = arith.mulf %51, %52 : vector<4x4xf32>
      %54 = arith.mulf %20, %53 : vector<4x4xf32>
      %55 = vector.broadcast %35 : vector<4x1xf32> to vector<4x4xf32>
      %56 = vector.broadcast %50 : vector<1x4xf32> to vector<4x4xf32>
      %57 = arith.mulf %55, %56 : vector<4x4xf32>
      %58 = arith.mulf %21, %57 : vector<4x4xf32>
      %59 = vector.broadcast %40 : vector<4x1xf32> to vector<4x4xf32>
      %60 = vector.broadcast %50 : vector<1x4xf32> to vector<4x4xf32>
      %61 = arith.mulf %59, %60 : vector<4x4xf32>
      %62 = arith.mulf %22, %61 : vector<4x4xf32>
      %cst_37 = arith.constant 2.000000e+00 : f32
      %63 = vector.broadcast %cst_37 : f32 to vector<4x4xf32>
      %64 = arith.mulf %54, %63 : vector<4x4xf32>
      %65 = math.exp %64 : vector<4x4xf32>
      %cst_38 = arith.constant 0.000000e+00 : f32
      %66 = vector.broadcast %cst_38 : f32 to vector<4x4xf32>
      %67 = arith.select %26, %65, %66 : vector<4x4xi1>, vector<4x4xf32>
      %cst_39 = arith.constant 2.000000e+00 : f32
      %68 = vector.broadcast %cst_39 : f32 to vector<4x4xf32>
      %69 = arith.mulf %62, %68 : vector<4x4xf32>
      %70 = math.exp %69 : vector<4x4xf32>
      %cst_40 = arith.constant 0.000000e+00 : f32
      %71 = vector.broadcast %cst_40 : f32 to vector<4x4xf32>
      %72 = arith.select %26, %70, %71 : vector<4x4xi1>, vector<4x4xf32>
      %cst_41 = arith.constant 2.000000e+00 : f32
      %73 = vector.broadcast %cst_41 : f32 to vector<4x4xf32>
      %74 = arith.mulf %58, %73 : vector<4x4xf32>
      %75 = math.exp %74 : vector<4x4xf32>
      %cst_42 = arith.constant dense<0.000000e+00> : vector<4xf32>
      %76 = vector.multi_reduction <add>, %67, %cst_42 [1] : vector<4x4xf32> to vector<4xf32>
      %77 = vector.shape_cast %76 : vector<4xf32> to vector<4x1xf32>
      %cst_43 = arith.constant dense<0.000000e+00> : vector<4xf32>
      %78 = vector.multi_reduction <add>, %75, %cst_43 [1] : vector<4x4xf32> to vector<4xf32>
      %79 = vector.shape_cast %78 : vector<4xf32> to vector<4x1xf32>
      %80 = arith.addf %77, %79 : vector<4x1xf32>
      %cst_44 = arith.constant dense<0.000000e+00> : vector<4xf32>
      %81 = vector.multi_reduction <add>, %72, %cst_44 [0] : vector<4x4xf32> to vector<4xf32>
      %82 = vector.shape_cast %81 : vector<4xf32> to vector<1x4xf32>
      %cst_45 = arith.constant dense<0.000000e+00> : vector<4xf32>
      %83 = vector.multi_reduction <add>, %75, %cst_45 [0] : vector<4x4xf32> to vector<4xf32>
      %84 = vector.shape_cast %83 : vector<4xf32> to vector<1x4xf32>
      %85 = arith.addf %82, %84 : vector<1x4xf32>
      %86 = math.log %80 : vector<4x1xf32>
      %87 = vector.shape_cast %86 : vector<4x1xf32> to vector<1x4x1xf32>
      %cst_46 = arith.constant dense<0.000000e+00> : vector<1xf32>
      %88 = vector.multi_reduction <add>, %87, %cst_46 [1, 2] : vector<1x4x1xf32> to vector<1xf32>
      %89 = vector.shape_cast %88 : vector<1xf32> to vector<1x1x1xf32>
      %90 = vector.extract %89[0, 0, 0] : f32 from vector<1x1x1xf32>
      %91 = math.log %85 : vector<1x4xf32>
      %92 = vector.shape_cast %91 : vector<1x4xf32> to vector<1x1x4xf32>
      %cst_47 = arith.constant dense<0.000000e+00> : vector<1xf32>
      %93 = vector.multi_reduction <add>, %92, %cst_47 [1, 2] : vector<1x1x4xf32> to vector<1xf32>
      %94 = vector.shape_cast %93 : vector<1xf32> to vector<1x1x1xf32>
      %95 = vector.extract %94[0, 0, 0] : f32 from vector<1x1x1xf32>
      %96 = arith.addf %90, %95 : f32
      %cst_48 = arith.constant 0.000000e+00 : f32
      %97 = vector.broadcast %cst_48 : f32 to vector<4x4xf32>
      %98 = arith.select %25, %58, %97 : vector<4x4xi1>, vector<4x4xf32>
      %99 = vector.shape_cast %98 : vector<4x4xf32> to vector<1x4x4xf32>
      %cst_49 = arith.constant dense<0.000000e+00> : vector<1xf32>
      %100 = vector.multi_reduction <add>, %99, %cst_49 [1, 2] : vector<1x4x4xf32> to vector<1xf32>
      %101 = vector.shape_cast %100 : vector<1xf32> to vector<1x1x1xf32>
      %102 = vector.extract %101[0, 0, 0] : f32 from vector<1x1x1xf32>
      %cst_50 = arith.constant 4.000000e+00 : f32
      %103 = arith.mulf %cst_50, %102 : f32
      %104 = arith.subf %96, %103 : f32
      %cst_51 = arith.constant 8.000000e+00 : f32
      %105 = arith.divf %104, %cst_51 : f32
      %c0_52 = arith.constant 0 : index
      %c0_53 = arith.constant 0 : index
      %106 = memref.load %arg3[%c0_52, %c0_53] : memref<1x1xf32, #tpu.memory_space<smem>>
      memref.store %105, %arg3[%c0_52, %c0_53] : memref<1x1xf32, #tpu.memory_space<smem>>
    } else {
    }
    return
  }
  func.func @transform_0(%arg0: i32) -> (i32, i32) {
    %c0_i32 = arith.constant 0 : i32
    %c0_i32_0 = arith.constant 0 : i32
    return %c0_i32, %arg0 : i32, i32
  }
  func.func @transform_1(%arg0: i32) -> (i32, i32) {
    %c0_i32 = arith.constant 0 : i32
    %c0_i32_0 = arith.constant 0 : i32
    return %c0_i32, %arg0 : i32, i32
  }
  func.func @transform_2(%arg0: i32) -> (i32, i32) {
    %c0_i32 = arith.constant 0 : i32
    %c0_i32_0 = arith.constant 0 : i32
    %c0_i32_1 = arith.constant 0 : i32
    return %c0_i32, %c0_i32_0 : i32, i32
  }
}

</mosaic_0001>

<llo_original>
// kernel: tpu_custom_call.1
$region0: #{tpu_custom_call.1}
  #allocation0 [shape = 'u32[]', space=smem, size = 0x4, offset = 0x4, fixed_abs, tag = 'smem constant byte address 0x4 - core index']
  #allocation1 [shape = 'u32[144,128]{1,0:T(1,128)}', space=vmem, size = 0x12000, scoped, tag = 'internal scratch']
  #allocation2 [shape = 'f32[4,4]{1,0:T(4,128)}', space=vmem, size = 0x800, scoped, tag = 'scratch operand']
  #allocation3 [shape = 'f32[4,4]{1,0:T(4,128)}', space=vmem, size = 0x800, scoped, tag = 'scratch operand']
  #allocation4 [shape = 'f32[4,4]{1,0:T(4,128)}', space=vmem, size = 0x800, scoped, tag = 'scratch operand']
  %s0 = inlined_call_operand.hbm [shape: f32[4,256], index: 0, kind: input, shape index: {}]
  %s1 = inlined_call_operand.hbm [shape: f32[4,256], index: 1, kind: input, shape index: {}]
  %s2 = inlined_call_operand.hbm [shape: f32[1,1], index: 2, kind: output, shape index: {}]
  %s3 = sld [smem:[#allocation0]]
  $region34: #{tpu_custom_call.1} parent=0
    _
  %s5 = ssub.s32 1, %s3
  %s6 = scalar_select 0, %s5, %s3
  $region1: #{tpu_custom_call.1} parent=0
    #allocation5 [shape = 'u8[4096]{0}', space=vmem, size = 0x1000, scoped, tag = 'input window, operand 0, single buffered']
    #allocation6 [shape = 's32[1]{0}', space=sflag, size = 0x4, scoped, tag = 'scoped memory for tpu_custom_call.1']
    #allocation7 [shape = 's32[1]{0}', space=sflag, size = 0x4, scoped, tag = 'scoped memory for tpu_custom_call.1']
    #allocation8 [shape = 'u8[4096]{0}', space=vmem, size = 0x1000, scoped, tag = 'input window, operand 1, single buffered']
    #allocation9 [shape = 's32[1]{0}', space=sflag, size = 0x4, scoped, tag = 'scoped memory for tpu_custom_call.1']
    #allocation10 [shape = 'u8[512]{0}', space=smem, size = 0x200, scoped, tag = 'output window, operand 0, single buffered']
    %7 = vsyncpa [#allocation6], 0
    %8 = vsyncpa [#allocation9], 0
    %9 = vsyncpa [#allocation7], 0
    // Predicated region
    $region2: #{tpu_custom_call.1} parent=1 // pred_check
      _
    $region3: #{tpu_custom_call.1} parent=1 // pred_check_branch
      %11 = sbr.rel (0) target = $region5
    $region4: #{tpu_custom_call.1} parent=1 // pred_region
      %s13 = ssub.s32 128, 128
      %14 = vsyncadd [#allocation6], %s13
      %s16 = sshll.u32 [#allocation5], 4
      %s17 = int_to_ptr.vmem [resolvable:$true] %s16
      %19 = dma.hbm_to_vmem [thread:$0]  %s0, 128, %s17, [#allocation6]
    $region5: #{tpu_custom_call.1} parent=1 // pred_fallthru
      _
    // Predicated region
    $region6: #{tpu_custom_call.1} parent=1 // pred_check
      _
    $region7: #{tpu_custom_call.1} parent=1 // pred_check_branch
      %21 = sbr.rel (0) target = $region9
    $region8: #{tpu_custom_call.1} parent=1 // pred_region
      %s23 = ssub.s32 128, 128
      %24 = vsyncadd [#allocation9], %s23
      %s26 = sshll.u32 [#allocation8], 4
      %s27 = int_to_ptr.vmem [resolvable:$true] %s26
      %29 = dma.hbm_to_vmem [thread:$0]  %s1, 128, %s27, [#allocation9]
    $region9: #{tpu_custom_call.1} parent=1 // pred_fallthru
      _
    // Predicated region
    $region10: #{tpu_custom_call.1} parent=1 // pred_check
      _
    $region11: #{tpu_custom_call.1} parent=1 // pred_check_branch
      %31 = sbr.rel (0) target = $region13
    $region12: #{tpu_custom_call.1} parent=1 // pred_region
      %32 = dma.done [#allocation6], 128
    $region13: #{tpu_custom_call.1} parent=1 // pred_fallthru
      _
    // Predicated region
    $region14: #{tpu_custom_call.1} parent=1 // pred_check
      _
    $region15: #{tpu_custom_call.1} parent=1 // pred_check_branch
      %34 = sbr.rel (0) target = $region17
    $region16: #{tpu_custom_call.1} parent=1 // pred_region
      %35 = dma.done [#allocation9], 128
    $region17: #{tpu_custom_call.1} parent=1 // pred_fallthru
      _
    %p36 = scmp.eq.s32.totalorder 0, 0
    // Predicated region
    $region18: #{tpu_custom_call.1} parent=1 // pred_check
      %p37 = pneg %p36
    $region19: #{tpu_custom_call.1} parent=1 // pred_check_branch
      %39 = sbr.rel (%p37) target = $region21
    $region20: #{tpu_custom_call.1} parent=1 // pred_region
      %vm40 = vcmask 27648
      %41 = vst.msk [vmem:[#allocation2] sm:$0xf] %vm40, 0.0
      %42 = vst.msk [vmem:[#allocation3] sm:$0xf] %vm40, 0.0
      %43 = vst.msk [vmem:[#allocation4] sm:$0xf] %vm40, 0.0
    $region21: #{tpu_custom_call.1} parent=1 // pred_fallthru
      _
    %v44 = vld [vmem:[#allocation5] sm:$0xff]
    %v45 = vld [vmem:[#allocation8] sm:$0xff]
    %v46 = vld [vmem:[#allocation2] sm:$0xf]
    %v48 = vcombine.high %v44, %v44
    %50 = vmatprep.subr.mxu0 %v48
    %51 = vmatpush1.xpose.msra.mxu0 %v44
    %52 = vmatprep.subr.mxu0 0.0
    %53 = vmatpush1.xpose.msra.mxu0 0.0
    %54 = vmatprep.subr.mxu0 0.0
    %55 = vmatpush1.xpose.msra.mxu0 0.0
    %56 = vmatprep.subr.mxu0 0.0
    %57 = vmatpush1.xpose.msra.mxu0 0.0
    %58 = vmatprep.subr.mxu0 0.0
    %59 = vmatpush1.xpose.msra.mxu0 0.0
    %60 = vmatprep.subr.mxu0 0.0
    %61 = vmatpush1.xpose.msra.mxu0 0.0
    %62 = vmatprep.subr.mxu0 0.0
    %63 = vmatpush1.xpose.msra.mxu0 0.0
    %64 = vmatprep.subr.mxu0 0.0
    %65 = vmatpush1.xpose.msra.mxu0 0.0
    %66 = vmatprep.subr.mxu0 0.0
    %67 = vmatpush1.xpose.msra.mxu0 0.0
    %68 = vmatprep.subr.mxu0 0.0
    %69 = vmatpush1.xpose.msra.mxu0 0.0
    %70 = vmatprep.subr.mxu0 0.0
    %71 = vmatpush1.xpose.msra.mxu0 0.0
    %72 = vmatprep.subr.mxu0 0.0
    %73 = vmatpush1.xpose.msra.mxu0 0.0
    %74 = vmatprep.subr.mxu0 0.0
    %75 = vmatpush1.xpose.msra.mxu0 0.0
    %76 = vmatprep.subr.mxu0 0.0
    %77 = vmatpush1.xpose.msra.mxu0 0.0
    %78 = vmatprep.subr.mxu0 0.0
    %79 = vmatpush1.xpose.msra.mxu0 0.0
    %80 = vmatprep.subr.mxu0 0.0
    %81 = vmatpush1.xpose.msra.mxu0 0.0
    %82 = vmatprep.subr.mxu0 0.0
    %83 = vmatpush1.xpose.msra.mxu0 0.0
    %84 = vmatprep.subr.mxu0 0.0
    %85 = vmatpush1.xpose.msra.mxu0 0.0
    %86 = vmatprep.subr.mxu0 0.0
    %87 = vmatpush1.xpose.msra.mxu0 0.0
    %88 = vmatprep.subr.mxu0 0.0
    %89 = vmatpush1.xpose.msra.mxu0 0.0
    %90 = vmatprep.subr.mxu0 0.0
    %91 = vmatpush1.xpose.msra.mxu0 0.0
    %92 = vmatprep.subr.mxu0 0.0
    %93 = vmatpush1.xpose.msra.mxu0 0.0
    %94 = vmatprep.subr.mxu0 0.0
    %95 = vmatpush1.xpose.msra.mxu0 0.0
    %96 = vmatprep.subr.mxu0 0.0
    %97 = vmatpush1.xpose.msra.mxu0 0.0
    %98 = vmatprep.subr.mxu0 0.0
    %99 = vmatpush1.xpose.msra.mxu0 0.0
    %100 = vmatprep.subr.mxu0 0.0
    %101 = vmatpush1.xpose.msra.mxu0 0.0
    %102 = vmatprep.subr.mxu0 0.0
    %103 = vmatpush1.xpose.msra.mxu0 0.0
    %104 = vmatprep.subr.mxu0 0.0
    %105 = vmatpush1.xpose.msra.mxu0 0.0
    %106 = vmatprep.subr.mxu0 0.0
    %107 = vmatpush1.xpose.msra.mxu0 0.0
    %108 = vmatprep.subr.mxu0 0.0
    %109 = vmatpush1.xpose.msra.mxu0 0.0
    %110 = vmatprep.subr.mxu0 0.0
    %111 = vmatpush1.xpose.msra.mxu0 0.0
    %112 = vmatprep.subr.mxu0 0.0
    %113 = vmatpush1.xpose.msra.mxu0 0.0
    %114 = vmatprep.mubr.f32.mxu0 %v48
    %115 = vmatmul.mubr.f32.gmra.mrb[0].mxu0 %v44
    %v116 = vpop.f32.mrb[0].mxu0
    %v117 = vadd.f32 0.0, %v116
    %v118 = vpop.f32.mrb[0].mxu0
    %119 = vdwg.mxu0
    %v120 = vadd.f32 %v46, %v117
    %vm121 = vcmask 27648
    %122 = vst.msk [vmem:[#allocation2] sm:$0xf] %vm121, %v120
    %v123 = vld [vmem:[#allocation3] sm:$0xf]
    %v125 = vcombine.high %v45, %v45
    %127 = vmatprep.subr.mxu0 %v125
    %128 = vmatpush1.xpose.msra.mxu0 %v45
    %129 = vmatprep.subr.mxu0 0.0
    %130 = vmatpush1.xpose.msra.mxu0 0.0
    %131 = vmatprep.subr.mxu0 0.0
    %132 = vmatpush1.xpose.msra.mxu0 0.0
    %133 = vmatprep.subr.mxu0 0.0
    %134 = vmatpush1.xpose.msra.mxu0 0.0
    %135 = vmatprep.subr.mxu0 0.0
    %136 = vmatpush1.xpose.msra.mxu0 0.0
    %137 = vmatprep.subr.mxu0 0.0
    %138 = vmatpush1.xpose.msra.mxu0 0.0
    %139 = vmatprep.subr.mxu0 0.0
    %140 = vmatpush1.xpose.msra.mxu0 0.0
    %141 = vmatprep.subr.mxu0 0.0
    %142 = vmatpush1.xpose.msra.mxu0 0.0
    %143 = vmatprep.subr.mxu0 0.0
    %144 = vmatpush1.xpose.msra.mxu0 0.0
    %145 = vmatprep.subr.mxu0 0.0
    %146 = vmatpush1.xpose.msra.mxu0 0.0
    %147 = vmatprep.subr.mxu0 0.0
    %148 = vmatpush1.xpose.msra.mxu0 0.0
    %149 = vmatprep.subr.mxu0 0.0
    %150 = vmatpush1.xpose.msra.mxu0 0.0
    %151 = vmatprep.subr.mxu0 0.0
    %152 = vmatpush1.xpose.msra.mxu0 0.0
    %153 = vmatprep.subr.mxu0 0.0
    %154 = vmatpush1.xpose.msra.mxu0 0.0
    %155 = vmatprep.subr.mxu0 0.0
    %156 = vmatpush1.xpose.msra.mxu0 0.0
    %157 = vmatprep.subr.mxu0 0.0
    %158 = vmatpush1.xpose.msra.mxu0 0.0
    %159 = vmatprep.subr.mxu0 0.0
    %160 = vmatpush1.xpose.msra.mxu0 0.0
    %161 = vmatprep.subr.mxu0 0.0
    %162 = vmatpush1.xpose.msra.mxu0 0.0
    %163 = vmatprep.subr.mxu0 0.0
    %164 = vmatpush1.xpose.msra.mxu0 0.0
    %165 = vmatprep.subr.mxu0 0.0
    %166 = vmatpush1.xpose.msra.mxu0 0.0
    %167 = vmatprep.subr.mxu0 0.0
    %168 = vmatpush1.xpose.msra.mxu0 0.0
    %169 = vmatprep.subr.mxu0 0.0
    %170 = vmatpush1.xpose.msra.mxu0 0.0
    %171 = vmatprep.subr.mxu0 0.0
    %172 = vmatpush1.xpose.msra.mxu0 0.0
    %173 = vmatprep.subr.mxu0 0.0
    %174 = vmatpush1.xpose.msra.mxu0 0.0
    %175 = vmatprep.subr.mxu0 0.0
    %176 = vmatpush1.xpose.msra.mxu0 0.0
    %177 = vmatprep.subr.mxu0 0.0
    %178 = vmatpush1.xpose.msra.mxu0 0.0
    %179 = vmatprep.subr.mxu0 0.0
    %180 = vmatpush1.xpose.msra.mxu0 0.0
    %181 = vmatprep.subr.mxu0 0.0
    %182 = vmatpush1.xpose.msra.mxu0 0.0
    %183 = vmatprep.subr.mxu0 0.0
    %184 = vmatpush1.xpose.msra.mxu0 0.0
    %185 = vmatprep.subr.mxu0 0.0
    %186 = vmatpush1.xpose.msra.mxu0 0.0
    %187 = vmatprep.subr.mxu0 0.0
    %188 = vmatpush1.xpose.msra.mxu0 0.0
    %189 = vmatprep.subr.mxu0 0.0
    %190 = vmatpush1.xpose.msra.mxu0 0.0
    %191 = vmatprep.mubr.f32.mxu0 %v48
    %192 = vmatmul.mubr.f32.gmra.mrb[0].mxu0 %v44
    %v193 = vpop.f32.mrb[0].mxu0
    %v194 = vadd.f32 0.0, %v193
    %v195 = vpop.f32.mrb[0].mxu0
    %196 = vdwg.mxu0
    %v197 = vadd.f32 %v123, %v194
    %198 = vst.msk [vmem:[#allocation3] sm:$0xf] %vm121, %v197
    %v199 = vld [vmem:[#allocation4] sm:$0xf]
    %200 = vmatprep.subr.mxu0 %v125
    %201 = vmatpush1.xpose.msra.mxu0 %v45
    %202 = vmatprep.subr.mxu0 0.0
    %203 = vmatpush1.xpose.msra.mxu0 0.0
    %204 = vmatprep.subr.mxu0 0.0
    %205 = vmatpush1.xpose.msra.mxu0 0.0
    %206 = vmatprep.subr.mxu0 0.0
    %207 = vmatpush1.xpose.msra.mxu0 0.0
    %208 = vmatprep.subr.mxu0 0.0
    %209 = vmatpush1.xpose.msra.mxu0 0.0
    %210 = vmatprep.subr.mxu0 0.0
    %211 = vmatpush1.xpose.msra.mxu0 0.0
    %212 = vmatprep.subr.mxu0 0.0
    %213 = vmatpush1.xpose.msra.mxu0 0.0
    %214 = vmatprep.subr.mxu0 0.0
    %215 = vmatpush1.xpose.msra.mxu0 0.0
    %216 = vmatprep.subr.mxu0 0.0
    %217 = vmatpush1.xpose.msra.mxu0 0.0
    %218 = vmatprep.subr.mxu0 0.0
    %219 = vmatpush1.xpose.msra.mxu0 0.0
    %220 = vmatprep.subr.mxu0 0.0
    %221 = vmatpush1.xpose.msra.mxu0 0.0
    %222 = vmatprep.subr.mxu0 0.0
    %223 = vmatpush1.xpose.msra.mxu0 0.0
    %224 = vmatprep.subr.mxu0 0.0
    %225 = vmatpush1.xpose.msra.mxu0 0.0
    %226 = vmatprep.subr.mxu0 0.0
    %227 = vmatpush1.xpose.msra.mxu0 0.0
    %228 = vmatprep.subr.mxu0 0.0
    %229 = vmatpush1.xpose.msra.mxu0 0.0
    %230 = vmatprep.subr.mxu0 0.0
    %231 = vmatpush1.xpose.msra.mxu0 0.0
    %232 = vmatprep.subr.mxu0 0.0
    %233 = vmatpush1.xpose.msra.mxu0 0.0
    %234 = vmatprep.subr.mxu0 0.0
    %235 = vmatpush1.xpose.msra.mxu0 0.0
    %236 = vmatprep.subr.mxu0 0.0
    %237 = vmatpush1.xpose.msra.mxu0 0.0
    %238 = vmatprep.subr.mxu0 0.0
    %239 = vmatpush1.xpose.msra.mxu0 0.0
    %240 = vmatprep.subr.mxu0 0.0
    %241 = vmatpush1.xpose.msra.mxu0 0.0
    %242 = vmatprep.subr.mxu0 0.0
    %243 = vmatpush1.xpose.msra.mxu0 0.0
    %244 = vmatprep.subr.mxu0 0.0
    %245 = vmatpush1.xpose.msra.mxu0 0.0
    %246 = vmatprep.subr.mxu0 0.0
    %247 = vmatpush1.xpose.msra.mxu0 0.0
    %248 = vmatprep.subr.mxu0 0.0
    %249 = vmatpush1.xpose.msra.mxu0 0.0
    %250 = vmatprep.subr.mxu0 0.0
    %251 = vmatpush1.xpose.msra.mxu0 0.0
    %252 = vmatprep.subr.mxu0 0.0
    %253 = vmatpush1.xpose.msra.mxu0 0.0
    %254 = vmatprep.subr.mxu0 0.0
    %255 = vmatpush1.xpose.msra.mxu0 0.0
    %256 = vmatprep.subr.mxu0 0.0
    %257 = vmatpush1.xpose.msra.mxu0 0.0
    %258 = vmatprep.subr.mxu0 0.0
    %259 = vmatpush1.xpose.msra.mxu0 0.0
    %260 = vmatprep.subr.mxu0 0.0
    %261 = vmatpush1.xpose.msra.mxu0 0.0
    %262 = vmatprep.subr.mxu0 0.0
    %263 = vmatpush1.xpose.msra.mxu0 0.0
    %264 = vmatprep.mubr.f32.mxu0 %v125
    %265 = vmatmul.mubr.f32.gmra.mrb[0].mxu0 %v45
    %v266 = vpop.f32.mrb[0].mxu0
    %v267 = vadd.f32 0.0, %v266
    %v268 = vpop.f32.mrb[0].mxu0
    %269 = vdwg.mxu0
    %v270 = vadd.f32 %v199, %v267
    %271 = vst.msk [vmem:[#allocation4] sm:$0xf] %vm121, %v270
    // Predicated region
    $region22: #{tpu_custom_call.1} parent=1 // pred_check
      %p272 = pneg %p36
    $region23: #{tpu_custom_call.1} parent=1 // pred_check_branch
      %274 = sbr.rel (%p272) target = $region25
    $region24: #{tpu_custom_call.1} parent=1 // pred_region
      %v275 = vld [vmem:[#allocation2] sm:$0xf]
      %v276 = vld [vmem:[#allocation3] sm:$0xf]
      %v277 = vld [vmem:[#allocation4] sm:$0xf]
      %v278 = vlaneseq
      %v279 = vshrl.u32 %v278, 7
      %v280 = vlaneseq
      %v281 = vand.u32 %v280, 127
      %vm282 = vcmp.eq.s32.totalorder %v279, %v281
      %vm283 = vmxor %vm282, 1
      %v284 = vsel %vm282, %v275, 0.0
      %v285 = vsel %vm282, %v277, 0.0
      %v286 = vsel %vm121, %v284, 0.0
      %287 = vadd.xlane.f32.xlu0 %v286
      %v288 = vpop.xlane.xlu0 %287
      %v289 = vmax.f32 %v288, 1e-24
      %v290 = vrsqrt.pop %v289
      %v291 = vsel %vm121, %v285, 0.0
      %292 = vadd.xlane.f32.xlu0 %v291
      %v293 = vpop.xlane.xlu0 %292
      %v294 = vmax.f32 %v293, 1e-24
      %v295 = vrsqrt.pop %v294
      %v296 = vrot.slane %v286, 4
      %v297 = vadd.f32 %v286, %v296
      %v298 = vrot.slane %v297, 2
      %v299 = vadd.f32 %v297, %v298
      %v300 = vrot.slane %v299, 1
      %v301 = vadd.f32 %v299, %v300
      %v302 = vmax.f32 %v301, 1e-24
      %v303 = vrsqrt.pop %v302
      %v304 = vrot.slane %v291, 4
      %v305 = vadd.f32 %v291, %v304
      %v306 = vrot.slane %v305, 2
      %v307 = vadd.f32 %v305, %v306
      %v308 = vrot.slane %v307, 1
      %v309 = vadd.f32 %v307, %v308
      %v310 = vmax.f32 %v309, 1e-24
      %v311 = vrsqrt.pop %v310
      %v312 = vmul.f32 %v290, %v303
      %v313 = vmul.f32 %v275, %v312
      %v314 = vmul.f32 %v290, %v311
      %v315 = vmul.f32 %v276, %v314
      %v316 = vmul.f32 %v295, %v311
      %v317 = vmul.f32 %v277, %v316
      %v318 = vmul.f32 %v313, 2.0
      %v319 = vmul.f32 %v318, 1.442695
      %v320 = vpow.pop %v319
      %v321 = vsel %vm283, %v320, 0.0
      %v322 = vmul.f32 %v317, 2.0
      %v323 = vmul.f32 %v322, 1.442695
      %v324 = vpow.pop %v323
      %v325 = vsel %vm283, %v324, 0.0
      %v326 = vmul.f32 %v315, 2.0
      %v327 = vmul.f32 %v326, 1.442695
      %v328 = vpow.pop %v327
      %v329 = vsel %vm121, %v321, 0.0
      %330 = vadd.xlane.f32.xlu0 %v329
      %v331 = vpop.xlane.xlu0 %330
      %v332 = vsel %vm121, %v328, 0.0
      %333 = vadd.xlane.f32.xlu0 %v332
      %v334 = vpop.xlane.xlu0 %333
      %v335 = vadd.f32 %v331, %v334
      %v336 = vsel %vm121, %v325, 0.0
      %v337 = vrot.slane %v336, 4
      %v338 = vadd.f32 %v336, %v337
      %v339 = vrot.slane %v338, 2
      %v340 = vadd.f32 %v338, %v339
      %v341 = vrot.slane %v340, 1
      %v342 = vadd.f32 %v340, %v341
      %v343 = vrot.slane %v332, 4
      %v344 = vadd.f32 %v332, %v343
      %v345 = vrot.slane %v344, 2
      %v346 = vadd.f32 %v344, %v345
      %v347 = vrot.slane %v346, 1
      %v348 = vadd.f32 %v346, %v347
      %v349 = vadd.f32 %v342, %v348
      %v350 = vlog2.pop %v335
      %v351 = vmul.f32 %v350, 0.6931472
      %vm352 = vcmask 3072
      %v353 = vsel %vm352, %v351, 0.0
      %354 = vadd.xlane.f32.xlu0 %v353
      %v355 = vpop.xlane.xlu0 %354
      %v356 = vrot.slane %v355, 4
      %v357 = vadd.f32 %v355, %v356
      %v358 = vrot.slane %v357, 2
      %v359 = vadd.f32 %v357, %v358
      %v360 = vrot.slane %v359, 1
      %v361 = vadd.f32 %v359, %v360
      %s362 = vtos %v361
      %v363 = vlog2.pop %v349
      %v364 = vmul.f32 %v363, 0.6931472
      %vm365 = vcmask 24576
      %v366 = vsel %vm365, %v364, 0.0
      %367 = vadd.xlane.f32.xlu0 %v366
      %v368 = vpop.xlane.xlu0 %367
      %v369 = vrot.slane %v368, 4
      %v370 = vadd.f32 %v368, %v369
      %v371 = vrot.slane %v370, 2
      %v372 = vadd.f32 %v370, %v371
      %v373 = vrot.slane %v372, 1
      %v374 = vadd.f32 %v372, %v373
      %s375 = vtos %v374
      %s376 = sadd.f32 %s362, %s375
      %v377 = vsel %vm282, %v315, 0.0
      %v378 = vsel %vm121, %v377, 0.0
      %379 = vadd.xlane.f32.xlu0 %v378
      %v380 = vpop.xlane.xlu0 %379
      %v381 = vrot.slane %v380, 4
      %v382 = vadd.f32 %v380, %v381
      %v383 = vrot.slane %v382, 2
      %v384 = vadd.f32 %v382, %v383
      %v385 = vrot.slane %v384, 1
      %v386 = vadd.f32 %v384, %v385
      %s387 = vtos %v386
      %s388 = smul.f32 %s387, 4.0
      %s389 = ssub.f32 %s376, %s388
      %v390 = vrcp.pop 8.0
      %s391 = vtos %v390
      %s392 = smul.f32 %s389, %s391
      %s393 = scalar_lea.smem [#allocation10], 0
      %394 = sst [smem:[%s393]] %s392
    $region25: #{tpu_custom_call.1} parent=1 // pred_fallthru
      _
    // Predicated region
    $region26: #{tpu_custom_call.1} parent=1 // pred_check
      _
    $region27: #{tpu_custom_call.1} parent=1 // pred_check_branch
      %396 = sbr.rel (0) target = $region29
    $region28: #{tpu_custom_call.1} parent=1 // pred_region
      %s398 = ssub.s32 16, 16
      %399 = vsyncadd [#allocation7], %s398
      %402 = dma.smem_to_hbm [#allocation10], 16, %s2, [#allocation7]
    $region29: #{tpu_custom_call.1} parent=1 // pred_fallthru
      _
    // Predicated region
    $region30: #{tpu_custom_call.1} parent=1 // pred_check
      _
    $region31: #{tpu_custom_call.1} parent=1 // pred_check_branch
      %404 = sbr.rel (0) target = $region33
    $region32: #{tpu_custom_call.1} parent=1 // pred_region
      %405 = dma.done [#allocation7], 16
    $region33: #{tpu_custom_call.1} parent=1 // pred_fallthru
      _
    %406 = sfence
    %407 = vsyncpa [#allocation6], 1
    %408 = vsyncpa [#allocation9], 1
    %409 = vsyncpa [#allocation7], 1

</llo_original>
